<compile_context>
chip_gen: v5e
topology: v5e:2x2
jax: 0.10.0
libtpu: 0.0.40
codegen_flags: <defaults>
</compile_context>

<pallas_src>
import math
from functools import partial

import jax
import jax.numpy as jnp
from jax import lax
from jax.experimental import pallas as pl
from jax.experimental.pallas import tpu as pltpu

NEG_INF = -1e30
_DEFAULT_SCOPED_VMEM = 32 * 1024 * 1024


# ---------------------------------------------------------------------------
# helpers
# ---------------------------------------------------------------------------
def _round_up(x: int, m: int) -> int:
    return ((x + m - 1) // m) * m


def _tile_target() -> int:
    """Generation-aware sequence-tile target (128 on v5e, 256 on v6e/v7x)."""
    try:
        kind = jax.devices()[0].device_kind.lower()
    except Exception:
        return 128
    if "v5 lite" in kind or "v5e" in kind or "v5litepod" in kind:
        return 128
    return 256


def _choose_tile(seq_len: int, dtype, target: int):
    """Pick an (8 f32 / 16 bf16)-aligned sequence tile and the padded seq length."""
    mult = 8 if jnp.dtype(dtype).itemsize >= 4 else 16
    if seq_len <= target:
        tile = _round_up(seq_len, mult)
        return tile, tile
    tile = _round_up(target, mult)
    return tile, _round_up(seq_len, tile)


def _maybe_vmem_limit(est_bytes: int):
    """Only raise the scoped-VMEM limit when needed; cap by physical capacity."""
    if est_bytes <= _DEFAULT_SCOPED_VMEM:
        return None
    try:
        cap = int(pltpu.get_tpu_info().vmem_capacity_bytes)
    except Exception:
        cap = 64 * 1024 * 1024   # conservative (v7x per-core VMEM)
    return min(int(est_bytes), int(cap * 0.9))


# ---------------------------------------------------------------------------
# Pass 1 & 3: fused linear projection kernel  (out[b, s, :] = x[b, s, :] @ W)
# ---------------------------------------------------------------------------
def _linear_kernel(x_ref, w_ref, o_ref):
    o_ref[0] = jnp.dot(x_ref[0], w_ref[...],
                       preferred_element_type=jnp.float32).astype(o_ref.dtype)


def _linear(x, w, tile_s):
    """x: (bsz, seq, din), w: (din, dout) -> (bsz, seq, dout)."""
    bsz, seq, din = x.shape
    dout = w.shape[1]
    n_s = seq // tile_s
    isz = jnp.dtype(x.dtype).itemsize
    # TODO(synk): for very large din/dout the (din, dout) weight must be tiled on a grid
    # axis (and could use pipeline_mode=pl.Buffered(1) since its block index is constant).
    est = 2 * tile_s * (din + dout) * isz + 2 * din * dout * isz + (1 << 20)
    return pl.pallas_call(
        _linear_kernel,
        out_shape=jax.ShapeDtypeStruct((bsz, seq, dout), x.dtype),
        grid_spec=pltpu.PrefetchScalarGridSpec(
            num_scalar_prefetch=0,
            grid=(bsz, n_s),
            in_specs=[
                pl.BlockSpec((1, tile_s, din), lambda b, s: (b, s, 0)),
                pl.BlockSpec((din, dout), lambda b, s: (0, 0)),
            ],
            out_specs=pl.BlockSpec((1, tile_s, dout), lambda b, s: (b, s, 0))),
        compiler_params=pltpu.CompilerParams(
            dimension_semantics=("parallel", "parallel"),
            vmem_limit_bytes=_maybe_vmem_limit(est)),
    )(x, w)


# ---------------------------------------------------------------------------
# Pass 2: causal flash attention (heads batched in the block)
# ---------------------------------------------------------------------------
def _flash_kernel(q_ref, k_ref, v_ref, o_ref, m_scr, l_scr, acc_scr, *, tile):
    qi = pl.program_id(1)
    ki = pl.program_id(2)
    n_kv = pl.num_programs(2)
    cdtype = q_ref.dtype          # MXU operand dtype (bf16 if inputs are bf16)

    @pl.when(ki == 0)
    def _init():
        # -inf init is NaN-safe: the first executed update for every q-tile is at
        # ki == 0, which is never fully masked (causal: col 0 <= every row), so
        # m_new is finite and alpha = exp(-inf - m_new) == 0.
        m_scr[...] = jnp.full_like(m_scr, -jnp.inf)
        l_scr[...] = jnp.zeros_like(l_scr)
        acc_scr[...] = jnp.zeros_like(acc_scr)

    def _update(apply_mask):
        q = q_ref[0]                                   # (H, tile, hd), scale pre-folded
        k = k_ref[0]
        v = v_ref[0]
        s = jnp.einsum("hqd,hkd->hqk", q, k,
                       preferred_element_type=jnp.float32)      # (H, tile, tile)
        if apply_mask:
            # Diagonal tile (qi == ki): global offsets cancel, local indices suffice.
            row = lax.broadcasted_iota(jnp.int32, (tile, tile), 0)
            col = lax.broadcasted_iota(jnp.int32, (tile, tile), 1)
            s = jnp.where((col <= row)[None], s, NEG_INF)
        m_prev = m_scr[...]
        m_new = jnp.maximum(m_prev, jnp.max(s, axis=-1, keepdims=True))
        alpha = jnp.exp(m_prev - m_new)
        p = jnp.exp(s - m_new)
        l_scr[...] = alpha * l_scr[...] + jnp.sum(p, axis=-1, keepdims=True)
        acc_scr[...] = alpha * acc_scr[...] + jnp.einsum(
            "hqk,hkd->hqd", p.astype(cdtype), v,
            preferred_element_type=jnp.float32)
        m_scr[...] = m_new

    @pl.when(ki < qi)              # strictly below the diagonal: no mask work at all
    def _full_tile():
        _update(apply_mask=False)

    @pl.when(ki == qi)             # diagonal-crossing tile: build/apply the causal mask
    def _diag_tile():
        _update(apply_mask=True)

    # ki > qi: fully masked -> no compute (and the K/V index_map is clamped, so the
    # already-resident block is re-used: no HBM DMA for these steps either).

    @pl.when(ki == n_kv - 1)
    def _finalize():
        # Exact normalization (once per q-tile; approx reciprocal not worth it here).
        o_ref[0] = (acc_scr[...] / l_scr[...]).astype(o_ref.dtype)


def _flash_attention(q, k, v, tile):
    """Causal flash attention. q/k/v: (bsz, n_heads, seq, head_dim); q pre-scaled."""
    bsz, n_heads, seq, head_dim = q.shape
    n_t = seq // tile
    isz = jnp.dtype(q.dtype).itemsize
    est = (2 * 4 * n_heads * tile * head_dim * isz        # q/k/v/o blocks, double-buffered
           + n_heads * tile * (8 + 4 * head_dim)          # m/l/acc scratch (f32)
           + 2 * n_heads * tile * tile * 4 + (1 << 20))   # in-flight scores/probs
    # TODO(synk): for very large n_heads*head_dim, split heads across an extra grid axis.

    # Causally-skipped steps (ki > qi) re-use the resident K/V block: no extra DMA.
    kv_index = lambda b, qi, ki: (b, 0, jnp.minimum(ki, qi), 0)
    q_index = lambda b, qi, ki: (b, 0, qi, 0)

    return pl.pallas_call(
        partial(_flash_kernel, tile=tile),
        out_shape=jax.ShapeDtypeStruct((bsz, n_heads, seq, head_dim), q.dtype),
        grid_spec=pltpu.PrefetchScalarGridSpec(
            num_scalar_prefetch=0,
            grid=(bsz, n_t, n_t),
            in_specs=[
                pl.BlockSpec((1, n_heads, tile, head_dim), q_index),
                pl.BlockSpec((1, n_heads, tile, head_dim), kv_index),
                pl.BlockSpec((1, n_heads, tile, head_dim), kv_index),
            ],
            out_specs=pl.BlockSpec((1, n_heads, tile, head_dim), q_index),
            scratch_shapes=[
                pltpu.VMEM((n_heads, tile, 1), jnp.float32),          # running max m
                pltpu.VMEM((n_heads, tile, 1), jnp.float32),          # running sum l
                pltpu.VMEM((n_heads, tile, head_dim), jnp.float32),   # running acc
            ]),
        compiler_params=pltpu.CompilerParams(
            dimension_semantics=("parallel", "parallel", "arbitrary"),
            vmem_limit_bytes=_maybe_vmem_limit(est)),
    )(q, k, v)


# ---------------------------------------------------------------------------
# Full forward
# ---------------------------------------------------------------------------
def attention_forward(x, wq, wk, wv, wo, *, n_heads: int):
    """x: (bsz, seq, dim); weights PyTorch-style (out_features, in_features)."""
    bsz, seq_len, dim = x.shape
    assert dim % n_heads == 0
    head_dim = dim // n_heads
    scale = 1.0 / math.sqrt(head_dim)
    dtype = x.dtype

    # One-time wrapper-side weight prep: fused (dim, 3*dim) QKV weight with the softmax
    # scale folded into the Q columns, plus (dim, dim) output weight. Weights follow the
    # activation dtype (bf16 activations -> bf16 MXU operands, f32 accumulation).
    w_qkv = jnp.concatenate([wq.T * scale, wk.T, wv.T], axis=1).astype(dtype)
    w_out = wo.T.astype(dtype)

    tile, seq_pad = _choose_tile(seq_len, dtype, _tile_target())
    x_p = x if seq_pad == seq_len else jnp.pad(
        x, ((0, 0), (0, seq_pad - seq_len), (0, 0)))
    # Right-padding is safe: padded K/V columns are causally masked for every real query
    # row, and padded query rows are sliced off below.

    # Pass 1: fused QKV projection (one wide MXU matmul per seq tile).
    qkv = _linear(x_p, w_qkv, tile)                       # (bsz, seq_pad, 3*dim)

    # Layout plumbing (XLA, one-time): head-major (bsz, n_heads, seq_pad, head_dim).
    qkv = qkv.reshape(bsz, seq_pad, 3, n_heads, head_dim)
    qkv = jnp.transpose(qkv, (2, 0, 3, 1, 4))
    q, k, v = qkv[0], qkv[1], qkv[2]

    # Pass 2: causal flash attention.
    ctx = _flash_attention(q, k, v, tile)                 # (bsz, H, seq_pad, hd)

    # Pass 3: fused output projection on the lane-dense (tile, dim) context.
    ctx = jnp.transpose(ctx, (0, 2, 1, 3)).reshape(bsz, seq_pad, dim)
    out = _linear(ctx, w_out, tile)                       # (bsz, seq_pad, dim)

    # TODO(synk): training-mode dropout (SDPA dropout_p + resid_dropout) not implemented.
    return out if seq_pad == seq_len else out[:, :seq_len, :]


# ---------------------------------------------------------------------------
# Pure-JAX reference (eval-mode PyTorch forward) and self-test
# ---------------------------------------------------------------------------
def reference_forward(x, wq, wk, wv, wo, *, n_heads: int):
    bsz, seq_len, dim = x.shape
    head_dim = dim // n_heads
    P = lax.Precision.HIGHEST
    q = jnp.einsum("bsd,fd->bsf", x, wq, precision=P)
    k = jnp.einsum("bsd,fd->bsf", x, wk, precision=P)
    v = jnp.einsum("bsd,fd->bsf", x, wv, precision=P)
    q = q.reshape(bsz, seq_len, n_heads, head_dim).transpose(0, 2, 1, 3)
    k = k.reshape(bsz, seq_len, n_heads, head_dim).transpose(0, 2, 1, 3)
    v = v.reshape(bsz, seq_len, n_heads, head_dim).transpose(0, 2, 1, 3)
    scores = jnp.einsum("bhqd,bhkd->bhqk", q, k, precision=P) / math.sqrt(head_dim)
    mask = jnp.tril(jnp.ones((seq_len, seq_len), dtype=bool))
    scores = jnp.where(mask, scores, -jnp.inf)
    attn = jax.nn.softmax(scores, axis=-1)
    out = jnp.einsum("bhqk,bhkd->bhqd", attn, v, precision=P)
    out = out.transpose(0, 2, 1, 3).reshape(bsz, seq_len, dim)
    return jnp.einsum("bsd,fd->bsf", out, wo, precision=P)


def _make_inputs(key, bsz, seq_len, dim):
    kx, kq, kk, kv, ko = jax.random.split(key, 5)
    bound = 1.0 / math.sqrt(dim)
    x = jax.random.normal(kx, (bsz, seq_len, dim), dtype=jnp.float32)
    wq = jax.random.uniform(kq, (dim, dim), jnp.float32, -bound, bound)
    wk = jax.random.uniform(kk, (dim, dim), jnp.float32, -bound, bound)
    wv = jax.random.uniform(kv, (dim, dim), jnp.float32, -bound, bound)
    wo = jax.random.uniform(ko, (dim, dim), jnp.float32, -bound, bound)
    return x, wq, wk, wv, wo


if __name__ == "__main__":
    def _check(key, bsz, seq_len, dim, n_heads, atol=5e-3):
        x, wq, wk, wv, wo = _make_inputs(key, bsz, seq_len, dim)
        out = jax.block_until_ready(
            attention_forward(x, wq, wk, wv, wo, n_heads=n_heads))
        ref = reference_forward(x, wq, wk, wv, wo, n_heads=n_heads)
        assert out.shape == ref.shape
        err = jnp.max(jnp.abs(out - ref))
        assert jnp.allclose(out, ref, atol=atol, rtol=atol), f"max abs err = {err}"

    # ModelArgs defaults: dim=16, n_heads=4 (head_dim=4); small test shapes.
    _check(jax.random.PRNGKey(0), bsz=2, seq_len=8, dim=16, n_heads=4)
    # Multi-tile flash path: exercises causal tile skipping / diagonal vs full tiles.
    _check(jax.random.PRNGKey(1), bsz=2, seq_len=512, dim=64, n_heads=4)
    # Non-multiple-of-8 sequence length: exercises the padded-sequence path.
    _check(jax.random.PRNGKey(2), bsz=2, seq_len=20, dim=32, n_heads=4)

    print("KERNEL_OK")
</pallas_src>

<mosaic_0001>
module attributes {stable_mosaic.version = 11 : i64} {
  func.func @_linear_kernel(%arg0: i32, %arg1: i32, %arg2: memref<1x8x16xf32, #tpu.memory_space<vmem>>, %arg3: memref<16x48xf32, #tpu.memory_space<vmem>>, %arg4: memref<1x8x48xf32, #tpu.memory_space<vmem>>) attributes {dimension_semantics = [#tpu.dimension_semantics<parallel>, #tpu.dimension_semantics<parallel>], iteration_bounds = array<i64: 2, 1>, scalar_prefetch = 0 : i64, scratch_operands = 0 : i64, tpu.core_type = #tpu.core_type<tc>, window_params = [{transform_indices = @transform_0, window_bounds = array<i64: 1, 8, 16>}, {pipeline_mode = #tpu.pipeline_mode<synchronous>, transform_indices = @transform_1, window_bounds = array<i64: 16, 48>}, {transform_indices = @transform_2, window_bounds = array<i64: 1, 8, 48>}]} {
    %c0 = arith.constant 0 : index
    %c0_0 = arith.constant 0 : index
    %c0_1 = arith.constant 0 : index
    %0 = vector.load %arg2[%c0, %c0_0, %c0_1] : memref<1x8x16xf32, #tpu.memory_space<vmem>>, vector<1x8x16xf32>
    %1 = vector.shape_cast %0 : vector<1x8x16xf32> to vector<8x16xf32>
    %c0_2 = arith.constant 0 : index
    %c0_3 = arith.constant 0 : index
    %2 = vector.load %arg3[%c0_2, %c0_3] : memref<16x48xf32, #tpu.memory_space<vmem>>, vector<16x48xf32>
    %cst = arith.constant dense<0.000000e+00> : vector<8x48xf32>
    %3 = tpu.matmul %1, %2, %cst {dimension_numbers = #tpu.dot_dimension_numbers<[1], [0], [0], [1], [0, 0, 1, 1], [], []>} : vector<8x16xf32>, vector<16x48xf32>, vector<8x48xf32> -> vector<8x48xf32>
    %c0_4 = arith.constant 0 : index
    %c0_5 = arith.constant 0 : index
    %c0_6 = arith.constant 0 : index
    %4 = vector.load %arg4[%c0_4, %c0_5, %c0_6] : memref<1x8x48xf32, #tpu.memory_space<vmem>>, vector<1x8x48xf32>
    %5 = vector.shape_cast %4 : vector<1x8x48xf32> to vector<8x48xf32>
    %6 = vector.shape_cast %3 : vector<8x48xf32> to vector<1x8x48xf32>
    tpu.vector_store %arg4[%c0_4, %c0_5, %c0_6], %6 {strides = array<i32>} : memref<1x8x48xf32, #tpu.memory_space<vmem>>, vector<1x8x48xf32>,
    return
  }
  func.func @transform_0(%arg0: i32, %arg1: i32) -> (i32, i32, i32) {
    %c0_i32 = arith.constant 0 : i32
    %c0_i32_0 = arith.constant 0 : i32
    return %arg0, %arg1, %c0_i32 : i32, i32, i32
  }
  func.func @transform_1(%arg0: i32, %arg1: i32) -> (i32, i32) {
    %c0_i32 = arith.constant 0 : i32
    %c0_i32_0 = arith.constant 0 : i32
    %c0_i32_1 = arith.constant 0 : i32
    return %c0_i32, %c0_i32_0 : i32, i32
  }
  func.func @transform_2(%arg0: i32, %arg1: i32) -> (i32, i32, i32) {
    %c0_i32 = arith.constant 0 : i32
    %c0_i32_0 = arith.constant 0 : i32
    return %arg0, %arg1, %c0_i32 : i32, i32, i32
  }
}

</mosaic_0001>

<llo_original>
// kernel: tpu_custom_call.1
$region0: #{tpu_custom_call.1}
  #allocation0 [shape = 'u32[]', space=smem, size = 0x4, offset = 0x4, fixed_abs, tag = 'smem constant byte address 0x4 - core index']
  #allocation1 [shape = 'u32[72,128]{1,0:T(1,128)}', space=vmem, size = 0x9000, scoped, tag = 'internal scratch']
  %s0 = inlined_call_operand.hbm [shape: f32[2,8,16], index: 0, kind: input, shape index: {}]
  %s1 = inlined_call_operand.hbm [shape: f32[16,48], index: 1, kind: input, shape index: {}]
  %s2 = inlined_call_operand.hbm [shape: f32[2,8,48], index: 2, kind: output, shape index: {}]
  %s3 = sld [smem:[#allocation0]]
  $region49: #{tpu_custom_call.1} parent=0
    _
  %s5 = ssub.s32 1, %s3
  %s6 = scalar_select 0, %s5, %s3
  $region1: #{tpu_custom_call.1} parent=0
    #allocation2 [shape = 'u8[8192]{0}', space=vmem, size = 0x2000, scoped, tag = 'input window, operand 0']
    #allocation3 [shape = 's32[2]{0}', space=sflag, size = 0x8, scoped, tag = 'scoped memory for tpu_custom_call.1']
    #allocation4 [shape = 's32[2]{0}', space=sflag, size = 0x8, scoped, tag = 'scoped memory for tpu_custom_call.1']
    #allocation5 [shape = 'u8[8192]{0}', space=vmem, size = 0x2000, scoped, tag = 'input window, operand 1, single buffered']
    #allocation6 [shape = 's32[1]{0}', space=sflag, size = 0x4, scoped, tag = 'scoped memory for tpu_custom_call.1']
    #allocation7 [shape = 'u8[8192]{0}', space=vmem, size = 0x2000, scoped, tag = 'output window, operand 0']
    %7 = vsyncpa [#allocation3], 0
    %s8 = scalar_lea.sflag [#allocation3], 1
    %9 = vsyncpa %s8, 0
    %10 = vsyncpa [#allocation6], 0
    %11 = vsyncpa [#allocation4], 0
    %s12 = scalar_lea.sflag [#allocation4], 1
    %13 = vsyncpa %s12, 0
    loop: start=0, step=1, limit=4
    $region2: #{tpu_custom_call.1} parent=1 // loop_pre_header
      _
    $region3: #{tpu_custom_call.1} parent=1 // loop_header
      %s15 = sphi 0, %s19
      %p16 = scmp.ge.s32.totalorder %s15, 4
      %s22 = sphi 0, %s34
      %s23 = sphi 0, %s30
      %s24 = sphi 0, %s22
      %s25 = sphi 0, %s23
      %s26 = sphi 0, %s24
      %s27 = sphi 0, %s25
      %s39 = sphi 0, %s41
      %s42 = sphi 0, %s39
      %s43 = sphi 0, %s42
      %s59 = sphi 0, %s43
      %s63 = sphi 0, %s63
      %s65 = sphi 0, %s63
      %s66 = sphi 0, %s65
      %s80 = sphi 0, %s66
      %s88 = sphi 0, %s90
      %s91 = sphi 0, %s88
      %s92 = sphi 0, %s91
      %s108 = sphi 0, %s92
    $region4: #{tpu_custom_call.1} parent=1 // loop_header_branch
      %18 = sbr.rel (%p16) target = $region8
    $region5: #{tpu_custom_call.1} parent=1 // loop_body
      %s20 = ssub.s32 %s15, 1
      %s21 = ssub.s32 %s15, 2
      %s28 = sadd.s32 1, %s23
      %p29 = scmp.ge.s32.totalorder %s28, 1
      %s30 = scalar_select %p29, 0, %s28
      %s31 = sadd.s32 1, %s22
      %s32 = scalar_select %p29, %s31, %s22
      %p33 = scmp.ge.s32.totalorder %s32, 2
      %s34 = scalar_select %p33, 0, %s32
      %s35 = ssub.s32 %s22, %s34
      %s36 = ssub.s32 %s23, %s30
      %s37 = sor.u32 %s35, %s36
      %p38 = scmp.eq.s32.totalorder %s37, 0
      %s40 = sadd.s32 %s39, 1
      %s41 = scalar_select %p38, %s39, %s40
      %p44 = pneg %p38
      %p45 = scmp.eq.s32.totalorder %s15, 1
      %p46 = por %p44, %p45
      %p47 = scmp.ne.s32.totalorder %s39, %s42
      %p48 = scmp.eq.s32.totalorder %s15, 0
      %p49 = por %p47, %p48
      %p50 = scmp.ne.s32.totalorder %s39, %s42
      %p51 = scmp.eq.s32.totalorder %s20, 1
      %p52 = por %p50, %p51
      %p53 = scmp.ne.s32.totalorder %s42, %s43
      %p54 = scmp.eq.s32.totalorder %s20, 0
      %p55 = por %p53, %p54
      %p56 = scmp.ne.s32.totalorder %s42, %s43
      %p57 = scmp.eq.s32.totalorder %s21, 1
      %p58 = por %p56, %p57
      %p60 = scmp.ne.s32.totalorder %s43, %s59
      %p61 = scmp.eq.s32.totalorder %s21, 0
      %p62 = por %p60, %p61
      %s64 = sadd.s32 %s63, 1
      %p67 = scmp.eq.s32.totalorder %s15, 1
      %p68 = scmp.ne.s32.totalorder %s63, %s65
      %p69 = scmp.eq.s32.totalorder %s15, 0
      %p70 = por %p68, %p69
      %p71 = scmp.ne.s32.totalorder %s63, %s65
      %p72 = scmp.eq.s32.totalorder %s20, 1
      %p73 = por %p71, %p72
      %p74 = scmp.ne.s32.totalorder %s65, %s66
      %p75 = scmp.eq.s32.totalorder %s20, 0
      %p76 = por %p74, %p75
      %p77 = scmp.ne.s32.totalorder %s65, %s66
      %p78 = scmp.eq.s32.totalorder %s21, 1
      %p79 = por %p77, %p78
      %p81 = scmp.ne.s32.totalorder %s66, %s80
      %p82 = scmp.eq.s32.totalorder %s21, 0
      %p83 = por %p81, %p82
      %s84 = ssub.s32 %s22, %s34
      %s85 = ssub.s32 %s23, %s30
      %s86 = sor.u32 %s84, %s85
      %p87 = scmp.eq.s32.totalorder %s86, 0
      %s89 = sadd.s32 %s88, 1
      %s90 = scalar_select %p87, %s88, %s89
      %p93 = pneg %p87
      %p94 = scmp.eq.s32.totalorder %s15, 1
      %p95 = por %p93, %p94
      %p96 = scmp.ne.s32.totalorder %s88, %s91
      %p97 = scmp.eq.s32.totalorder %s15, 0
      %p98 = por %p96, %p97
      %p99 = scmp.ne.s32.totalorder %s88, %s91
      %p100 = scmp.eq.s32.totalorder %s20, 1
      %p101 = por %p99, %p100
      %p102 = scmp.ne.s32.totalorder %s91, %s92
      %p103 = scmp.eq.s32.totalorder %s20, 0
      %p104 = por %p102, %p103
      %p105 = scmp.ne.s32.totalorder %s91, %s92
      %p106 = scmp.eq.s32.totalorder %s21, 1
      %p107 = por %p105, %p106
      %p109 = scmp.ne.s32.totalorder %s92, %s108
      %p110 = scmp.eq.s32.totalorder %s21, 0
      %p111 = por %p109, %p110
      %p112 = scmp.le.s32.totalorder 1, %s15
      %p113 = scmp.lt.s32.totalorder %s15, 3
      %p114 = pnand %p112, %p113
      %p115 = pneg %p114
      // Predicated region
      $region9: #{tpu_custom_call.1} parent=5 // pred_check
        _
      $region10: #{tpu_custom_call.1} parent=5 // pred_check_branch
        %117 = sbr.rel (%p114) target = $region12
      $region11: #{tpu_custom_call.1} parent=5 // pred_region
        %s118 = ssub.s32 %s15, 1
        // Predicated region
        $region13: #{tpu_custom_call.1} parent=11 // pred_check
          %p119 = pneg %p76
        $region14: #{tpu_custom_call.1} parent=11 // pred_check_branch
          %121 = sbr.rel (%p119) target = $region16
        $region15: #{tpu_custom_call.1} parent=11 // pred_region
          %123 = vsyncadd [#allocation6], 0
          %s124 = sshll.u32 %s1, 4
          %s125 = int_to_ptr.hbm [resolvable:$true] %s124
          %s126 = sshll.u32 [#allocation5], 4
          %s127 = int_to_ptr.vmem [resolvable:$true] %s126
          %132 = dma.hbm_to_vmem [thread:$0]  %s125, 256, %s127, [#allocation6], 128, 128, 8
        $region16: #{tpu_custom_call.1} parent=11 // pred_fallthru
          _
      $region12: #{tpu_custom_call.1} parent=5 // pred_fallthru
        _
      %p133 = scmp.lt.s32.totalorder %s15, 2
      // Predicated region
      $region17: #{tpu_custom_call.1} parent=5 // pred_check
        %p134 = pneg %p133
      $region18: #{tpu_custom_call.1} parent=5 // pred_check_branch
        %136 = sbr.rel (%p134) target = $region20
      $region19: #{tpu_custom_call.1} parent=5 // pred_region
        // Predicated region
        $region21: #{tpu_custom_call.1} parent=19 // pred_check
          %p137 = pneg %p49
        $region22: #{tpu_custom_call.1} parent=19 // pred_check_branch
          %139 = sbr.rel (%p137) target = $region24
        $region23: #{tpu_custom_call.1} parent=19 // pred_region
          %s140 = sand.u32 %s39, 1
          %s141 = scalar_lea.sflag [#allocation3], %s140
          %s142 = sand.u32 %s39, 1
          %s143 = smul.addr %s142, 8
          %s144 = scalar_lea.vmem [#allocation2], %s143
          %146 = vsyncadd %s141, 0
          %s147 = sadd.s32 %s23, %s22
          %s148 = smul.addr %s147, 8
          %s149 = scalar_lea.hbm %s0, %s148
          %s151 = sshll.u32 %s149, 4
          %s152 = int_to_ptr.hbm [resolvable:$true] %s151
          %s153 = sshll.u32 %s144, 4
          %s154 = int_to_ptr.vmem [resolvable:$true] %s153
          %156 = dma.hbm_to_vmem [thread:$0]  %s152, 128, %s154, %s141
        $region24: #{tpu_custom_call.1} parent=19 // pred_fallthru
          _
      $region20: #{tpu_custom_call.1} parent=5 // pred_fallthru
        _
      %p157 = scmp.le.s32.totalorder 1, %s15
      %p158 = scmp.lt.s32.totalorder %s15, 3
      %p159 = pnand %p157, %p158
      %p160 = pneg %p159
      // Predicated region
      $region25: #{tpu_custom_call.1} parent=5 // pred_check
        _
      $region26: #{tpu_custom_call.1} parent=5 // pred_check_branch
        %162 = sbr.rel (%p159) target = $region28
      $region27: #{tpu_custom_call.1} parent=5 // pred_region
        %s163 = ssub.s32 %s15, 1
        %s164 = sand.u32 %s42, 1
        %s165 = scalar_lea.sflag [#allocation3], %s164
        %s166 = sand.u32 %s42, 1
        %s167 = smul.addr %s166, 8
        %s168 = scalar_lea.vmem [#allocation2], %s167
        // Predicated region
        $region29: #{tpu_custom_call.1} parent=27 // pred_check
          %p169 = pneg %p55
        $region30: #{tpu_custom_call.1} parent=27 // pred_check_branch
          %171 = sbr.rel (%p169) target = $region32
        $region31: #{tpu_custom_call.1} parent=27 // pred_region
          %173 = dma.done %s165, 128
        $region32: #{tpu_custom_call.1} parent=27 // pred_fallthru
          _
        // Predicated region
        $region33: #{tpu_custom_call.1} parent=27 // pred_check
          %p174 = pneg %p76
        $region34: #{tpu_custom_call.1} parent=27 // pred_check_branch
          %176 = sbr.rel (%p174) target = $region36
        $region35: #{tpu_custom_call.1} parent=27 // pred_region
          %178 = dma.done [#allocation6], 256
        $region36: #{tpu_custom_call.1} parent=27 // pred_fallthru
          _
        %s179 = sand.u32 %s42, 1
        %s180 = scalar_lea.sflag [#allocation3], %s179
        %s181 = sand.u32 %s42, 1
        %s182 = smul.addr %s181, 8
        %s183 = scalar_lea.vmem [#allocation2], %s182
        %p184 = pneg %p55
        %p185 = pneg %p52
        %p186 = pneg %p76
        %p187 = pneg %p73
        %p188 = pneg %p104
        %p189 = pneg %p101
        %s190 = sand.u32 %s91, 1
        %s191 = scalar_lea.sflag [#allocation4], %s190
        %s192 = sand.u32 %s91, 1
        %s193 = smul.addr %s192, 8
        %s194 = scalar_lea.vmem [#allocation7], %s193
        %v195 = vld [vmem:[%s168] sm:$0xff]
        %v196 = vld [vmem:[#allocation5] sm:$0xff]
        %v197 = vld [vmem:[#allocation5 + $0x8] sm:$0xff]
        %vm198 = vcmask 130048
        %v200 = vsel %vm198, %v195, 0
        %202 = vmatpush.msra.mxu0 0.0
        %203 = vmatpush.msra.mxu0 0.0
        %204 = vmatpush.msra.mxu0 0.0
        %205 = vmatpush.msra.mxu0 0.0
        %206 = vmatpush.msra.mxu0 0.0
        %207 = vmatpush.msra.mxu0 0.0
        %208 = vmatpush.msra.mxu0 0.0
        %209 = vmatpush.msra.mxu0 0.0
        %210 = vmatpush.msra.mxu0 0.0
        %211 = vmatpush.msra.mxu0 0.0
        %212 = vmatpush.msra.mxu0 0.0
        %213 = vmatpush.msra.mxu0 0.0
        %214 = vmatpush.msra.mxu0 0.0
        %215 = vmatpush.msra.mxu0 0.0
        %216 = vmatpush.msra.mxu0 %v197
        %217 = vmatpush.msra.mxu0 %v196
        %218 = vmatmul.f32.gmra.mxu0 %v200
        %v219 = vpop.f32.mrf.mxu0
        %v220 = vadd.f32 0.0, %v219
        %221 = vdwg.mxu0
        %vm222 = vcmask 392192
        %223 = vst.msk [vmem:[%s194] sm:$0xff] %vm222, %v220
        %s224 = sand.u32 %s91, 1
        %s225 = scalar_lea.sflag [#allocation4], %s224
        %s226 = sand.u32 %s91, 1
        %s227 = smul.addr %s226, 8
        %s228 = scalar_lea.vmem [#allocation7], %s227
        // Predicated region
        $region37: #{tpu_custom_call.1} parent=27 // pred_check
          %p229 = pneg %p101
        $region38: #{tpu_custom_call.1} parent=27 // pred_check_branch
          %231 = sbr.rel (%p229) target = $region40
        $region39: #{tpu_custom_call.1} parent=27 // pred_region
          %233 = vsyncadd %s225, 0
          %s234 = sadd.s32 %s25, %s24
          %s235 = smul.addr %s234, 8
          %s236 = scalar_lea.hbm %s2, %s235
          %s238 = sshll.u32 %s228, 4
          %s239 = int_to_ptr.vmem [resolvable:$true] %s238
          %s240 = sshll.u32 %s236, 4
          %s241 = int_to_ptr.hbm [resolvable:$true] %s240
          %243 = dma.vmem_to_hbm [thread:$0]  %s239, 128, %s241, %s225
        $region40: #{tpu_custom_call.1} parent=27 // pred_fallthru
          _
      $region28: #{tpu_custom_call.1} parent=5 // pred_fallthru
        _
      %p244 = scmp.le.s32.totalorder 2, %s15
      // Predicated region
      $region41: #{tpu_custom_call.1} parent=5 // pred_check
        %p245 = pneg %p244
      $region42: #{tpu_custom_call.1} parent=5 // pred_check_branch
        %247 = sbr.rel (%p245) target = $region44
      $region43: #{tpu_custom_call.1} parent=5 // pred_region
        %s248 = ssub.s32 %s15, 2
        // Predicated region
        $region45: #{tpu_custom_call.1} parent=43 // pred_check
          %p249 = pneg %p107
        $region46: #{tpu_custom_call.1} parent=43 // pred_check_branch
          %251 = sbr.rel (%p249) target = $region48
        $region47: #{tpu_custom_call.1} parent=43 // pred_region
          %s252 = sand.u32 %s92, 1
          %s253 = scalar_lea.sflag [#allocation4], %s252
          %s254 = sand.u32 %s92, 1
          %s255 = smul.addr %s254, 8
          %s256 = scalar_lea.vmem [#allocation7], %s255
          %258 = dma.done %s253, 128
        $region48: #{tpu_custom_call.1} parent=43 // pred_fallthru
          _
      $region44: #{tpu_custom_call.1} parent=5 // pred_fallthru
        _
    $region6: #{tpu_custom_call.1} parent=1 // loop_footer
      %s19 = sadd.s32 1, %s15
    $region7: #{tpu_custom_call.1} parent=1 // loop_footer_branch
      %14 = sbr.rel target = $region3
    $region8: #{tpu_custom_call.1} parent=1 // loop_exit
      _
    %259 = vsyncpa [#allocation3], 1
    %s260 = scalar_lea.sflag [#allocation3], 1
    %261 = vsyncpa %s260, 1
    %262 = vsyncpa [#allocation6], 1
    %263 = vsyncpa [#allocation4], 1
    %s264 = scalar_lea.sflag [#allocation4], 1
    %265 = vsyncpa %s264, 1

</llo_original>
